<compile_context>
chip_gen: v7x
topology: tpu7x:2x2x1
jax: 0.10.0
libtpu: 0.0.40
codegen_flags: <defaults>
</compile_context>

<pallas_src>
import functools

import jax
import jax.numpy as jnp
from jax.experimental import pallas as pl
from jax.experimental.pallas import tpu as pltpu

_LANE = 128                              # TPU lane width (last dim of a vreg)
_SUBLANE = 8                             # f32 sublane granularity for block_shape
_TARGET_BLOCK_BYTES = 2 * 1024 * 1024    # ~2 MiB per input block
_MIN_TILE_ROWS = 256                     # keep blocks from getting tiny
_MULTI_STEP_ROW_THRESHOLD = 1024         # above this, force >= 4 grid steps


def _round_up(v: int, m: int) -> int:
    return ((v + m - 1) // m) * m


def _baz_kernel(a_ref, b_ref, o_ref, *, x):
    # Elementwise a + b * x; x folded in as a dtype-matched constant so the
    # whole tile stays in its native dtype (single VPU op chain, no upcast).
    xc = jnp.asarray(x, dtype=o_ref.dtype)
    o_ref[...] = a_ref[...] + b_ref[...] * xc


def baz_forward(a: jax.Array, b: jax.Array, x: float) -> jax.Array:
    """Computes a + b * x elementwise, matching Baz.forward semantics."""
    assert a.shape == b.shape and a.dtype == b.dtype
    # TODO(synk): for integer input dtypes PyTorch promotes b * 2.5 to float;
    # here x is cast to the input dtype, so use floating dtypes for exact parity.
    orig_shape = a.shape
    total = a.size

    # Flatten to a lane-dense (rows, 128) slab. Only pad when the element count
    # is not a multiple of the lane width — in the common case there is no
    # extra HBM pass from jnp.pad or an output slice.
    af = a.reshape(-1)
    bf = b.reshape(-1)
    rem = total % _LANE
    padded_total = total if rem == 0 else total + (_LANE - rem)
    if padded_total != total:
        af = jnp.pad(af, (0, padded_total - total))
        bf = jnp.pad(bf, (0, padded_total - total))
    rows = padded_total // _LANE
    a2 = af.reshape(rows, _LANE)
    b2 = bf.reshape(rows, _LANE)

    # ~2 MiB per input block regardless of dtype (4096 rows f32, 8192 bf16,
    # 16384 int8). Double-buffered VMEM: 3 arrays * 2 bufs * 2 MiB = 12 MiB,
    # inside every generation's default scoped-VMEM limit (incl. v5e's 16 MiB).
    itemsize = jnp.dtype(a.dtype).itemsize
    target_rows = max(_SUBLANE, _TARGET_BLOCK_BYTES // (_LANE * itemsize))

    if rows > _MULTI_STEP_ROW_THRESHOLD:
        # At least 4 grid steps: shards across both v7x TensorCores via the
        # "parallel" axis and keeps DMA prefetch/writeback overlapped, while
        # capping the block at ~2 MiB per input. Blocks stay (8,128)-aligned;
        # the ragged last block (if any) is masked by Pallas automatically.
        tile_rows = min(
            target_rows,
            max(_MIN_TILE_ROWS, _round_up(pl.cdiv(rows, 4), _SUBLANE)),
        )
        tile_rows = min(tile_rows, rows)
    else:
        # Small input: a single full-extent block (full array dims are always a
        # legal block_shape, even if rows isn't a multiple of 8).
        tile_rows = rows

    grid = (pl.cdiv(rows, tile_rows),)

    kernel = functools.partial(_baz_kernel, x=x)

    out2 = pl.pallas_call(
        kernel,
        out_shape=jax.ShapeDtypeStruct((rows, _LANE), a.dtype),
        grid=grid,
        in_specs=[
            pl.BlockSpec((tile_rows, _LANE), lambda i: (i, 0)),  # a
            pl.BlockSpec((tile_rows, _LANE), lambda i: (i, 0)),  # b
        ],
        out_specs=pl.BlockSpec((tile_rows, _LANE), lambda i: (i, 0)),
        compiler_params=pltpu.CompilerParams(
            dimension_semantics=("parallel",),
        ),
    )(a2, b2)

    out_flat = out2.reshape(-1)
    if padded_total != total:
        out_flat = out_flat[:total]
    return out_flat.reshape(orig_shape)


if __name__ == "__main__":
    key = jax.random.PRNGKey(0)
    ka, kb = jax.random.split(key)

    # Small NCHW shape consistent with the module's elementwise forward.
    shape = (2, 4, 16, 16)
    a = jax.random.normal(ka, shape, dtype=jnp.float32)
    b = jax.random.normal(kb, shape, dtype=jnp.float32)

    # Deterministic "parameter" x captured at construction time (Baz(x)).
    x = 2.5

    out = baz_forward(a, b, x)
    out = jax.block_until_ready(out)

    # Correctness check against plain JAX reference of a + b * x.
    ref = a + b * x
    assert out.shape == shape and out.dtype == jnp.float32
    assert jnp.allclose(out, ref, atol=1e-6, rtol=1e-6)

    print("KERNEL_OK")
</pallas_src>

<mosaic_0001>
module attributes {stable_mosaic.version = 11 : i64} {
  func.func @_baz_kernel(%arg0: i32, %arg1: memref<16x128xf32, #tpu.memory_space<vmem>>, %arg2: memref<16x128xf32, #tpu.memory_space<vmem>>, %arg3: memref<16x128xf32, #tpu.memory_space<vmem>>) attributes {dimension_semantics = [#tpu.dimension_semantics<parallel>], iteration_bounds = array<i64: 1>, scalar_prefetch = 0 : i64, scratch_operands = 0 : i64, tpu.core_type = #tpu.core_type<tc>, window_params = [{transform_indices = @transform_0, window_bounds = array<i64: 16, 128>}, {transform_indices = @transform_1, window_bounds = array<i64: 16, 128>}, {transform_indices = @transform_2, window_bounds = array<i64: 16, 128>}]} {
    %c0 = arith.constant 0 : index
    %c0_0 = arith.constant 0 : index
    %0 = vector.load %arg1[%c0, %c0_0] : memref<16x128xf32, #tpu.memory_space<vmem>>, vector<16x128xf32>
    %c0_1 = arith.constant 0 : index
    %c0_2 = arith.constant 0 : index
    %1 = vector.load %arg2[%c0_1, %c0_2] : memref<16x128xf32, #tpu.memory_space<vmem>>, vector<16x128xf32>
    %cst = arith.constant 2.500000e+00 : f32
    %2 = vector.broadcast %cst : f32 to vector<16x128xf32>
    %3 = arith.mulf %1, %2 : vector<16x128xf32>
    %4 = arith.addf %0, %3 : vector<16x128xf32>
    %c0_3 = arith.constant 0 : index
    %c0_4 = arith.constant 0 : index
    %5 = vector.load %arg3[%c0_3, %c0_4] : memref<16x128xf32, #tpu.memory_space<vmem>>, vector<16x128xf32>
    tpu.vector_store %arg3[%c0_3, %c0_4], %4 {strides = array<i32>} : memref<16x128xf32, #tpu.memory_space<vmem>>, vector<16x128xf32>,
    return
  }
  func.func @transform_0(%arg0: i32) -> (i32, i32) {
    %c0_i32 = arith.constant 0 : i32
    %c0_i32_0 = arith.constant 0 : i32
    return %arg0, %c0_i32 : i32, i32
  }
  func.func @transform_1(%arg0: i32) -> (i32, i32) {
    %c0_i32 = arith.constant 0 : i32
    %c0_i32_0 = arith.constant 0 : i32
    return %arg0, %c0_i32 : i32, i32
  }
  func.func @transform_2(%arg0: i32) -> (i32, i32) {
    %c0_i32 = arith.constant 0 : i32
    %c0_i32_0 = arith.constant 0 : i32
    return %arg0, %c0_i32 : i32, i32
  }
}

</mosaic_0001>

<llo_original>
// kernel: tpu_custom_call.1
$region0: #{tpu_custom_call.1}
  #allocation0 [shape = 'u32[]', space=smem, size = 0x4, offset = 0x4, fixed_abs, tag = 'smem constant byte address 0x4 - core index']
  #allocation1 [shape = 'u32[144,128]{1,0:T(1,128)}', space=vmem, size = 0x12000, scoped, tag = 'internal scratch']
  %s0 = inlined_call_operand.hbm [shape: f32[16,128], index: 0, kind: input, shape index: {}]
  %s1 = inlined_call_operand.hbm [shape: f32[16,128], index: 1, kind: input, shape index: {}]
  %s2 = inlined_call_operand.hbm [shape: f32[16,128], index: 2, kind: output, shape index: {}]
  %s3 = sld [smem:[#allocation0]]
  $region26: #{tpu_custom_call.1} parent=0
    _
  %s5 = ssub.s32 1, %s3
  %s6 = scalar_select 0, %s5, %s3
  $region1: #{tpu_custom_call.1} parent=0
    #allocation2 [shape = 'u8[8192]{0}', space=vmem, size = 0x2000, scoped, tag = 'input window, operand 0, single buffered']
    #allocation3 [shape = 's32[1]{0}', space=sflag, size = 0x4, scoped, tag = 'scoped memory for tpu_custom_call.1']
    #allocation4 [shape = 's32[1]{0}', space=sflag, size = 0x4, scoped, tag = 'scoped memory for tpu_custom_call.1']
    #allocation5 [shape = 'u8[8192]{0}', space=vmem, size = 0x2000, scoped, tag = 'input window, operand 1, single buffered']
    #allocation6 [shape = 's32[1]{0}', space=sflag, size = 0x4, scoped, tag = 'scoped memory for tpu_custom_call.1']
    #allocation7 [shape = 'u8[8192]{0}', space=vmem, size = 0x2000, scoped, tag = 'output window, operand 0, single buffered']
    %7 = vsyncpa [#allocation3], 0
    %8 = vsyncpa [#allocation6], 0
    %9 = vsyncpa [#allocation4], 0
    // Predicated region
    $region2: #{tpu_custom_call.1} parent=1 // pred_check
      _
    $region3: #{tpu_custom_call.1} parent=1 // pred_check_branch
      %11 = sbr.rel (0) target = $region5
    $region4: #{tpu_custom_call.1} parent=1 // pred_region
      %s13 = ssub.s32 256, 256
      %14 = vsyncadd [#allocation3], %s13
      %s15 = sshll.u32 [#allocation2], 4
      %s16 = int_to_ptr.vmem [resolvable:$true] %s15
      %21 = dma.hbm_to_vmem [thread:$0]  %s0, 256, %s16, [#allocation3], 128, 128, 8
    $region5: #{tpu_custom_call.1} parent=1 // pred_fallthru
      _
    // Predicated region
    $region6: #{tpu_custom_call.1} parent=1 // pred_check
      _
    $region7: #{tpu_custom_call.1} parent=1 // pred_check_branch
      %23 = sbr.rel (0) target = $region9
    $region8: #{tpu_custom_call.1} parent=1 // pred_region
      %s25 = ssub.s32 256, 256
      %26 = vsyncadd [#allocation6], %s25
      %s27 = sshll.u32 [#allocation5], 4
      %s28 = int_to_ptr.vmem [resolvable:$true] %s27
      %33 = dma.hbm_to_vmem [thread:$0]  %s1, 256, %s28, [#allocation6], 128, 128, 8
    $region9: #{tpu_custom_call.1} parent=1 // pred_fallthru
      _
    // Predicated region
    $region10: #{tpu_custom_call.1} parent=1 // pred_check
      _
    $region11: #{tpu_custom_call.1} parent=1 // pred_check_branch
      %35 = sbr.rel (0) target = $region13
    $region12: #{tpu_custom_call.1} parent=1 // pred_region
      %36 = dma.done [#allocation3], 256
    $region13: #{tpu_custom_call.1} parent=1 // pred_fallthru
      _
    // Predicated region
    $region14: #{tpu_custom_call.1} parent=1 // pred_check
      _
    $region15: #{tpu_custom_call.1} parent=1 // pred_check_branch
      %38 = sbr.rel (0) target = $region17
    $region16: #{tpu_custom_call.1} parent=1 // pred_region
      %39 = dma.done [#allocation6], 256
    $region17: #{tpu_custom_call.1} parent=1 // pred_fallthru
      _
    %v40 = vld [vmem:[#allocation2] sm:$0xff]
    %v41 = vld [vmem:[#allocation2 + $0x8] sm:$0xff]
    %v42 = vld [vmem:[#allocation5] sm:$0xff]
    %v43 = vld [vmem:[#allocation5 + $0x8] sm:$0xff]
    %v44 = vmul.f32 %v42, 2.5
    %v45 = vmul.f32 %v43, 2.5
    %v46 = vadd.f32 %v40, %v44
    %v47 = vadd.f32 %v41, %v45
    %48 = vst [vmem:[#allocation7] sm:$0xff] %v46
    %49 = vst [vmem:[#allocation7 + $0x8] sm:$0xff] %v47
    // Predicated region
    $region18: #{tpu_custom_call.1} parent=1 // pred_check
      _
    $region19: #{tpu_custom_call.1} parent=1 // pred_check_branch
      %51 = sbr.rel (0) target = $region21
    $region20: #{tpu_custom_call.1} parent=1 // pred_region
      %s53 = ssub.s32 256, 256
      %54 = vsyncadd [#allocation4], %s53
      %s55 = sshll.u32 [#allocation7], 4
      %s56 = int_to_ptr.vmem [resolvable:$true] %s55
      %61 = dma.vmem_to_hbm [thread:$0]  %s56, 256, %s2, [#allocation4], 128, 128, 8
    $region21: #{tpu_custom_call.1} parent=1 // pred_fallthru
      _
    // Predicated region
    $region22: #{tpu_custom_call.1} parent=1 // pred_check
      _
    $region23: #{tpu_custom_call.1} parent=1 // pred_check_branch
      %63 = sbr.rel (0) target = $region25
    $region24: #{tpu_custom_call.1} parent=1 // pred_region
      %64 = dma.done [#allocation4], 256
    $region25: #{tpu_custom_call.1} parent=1 // pred_fallthru
      _
    %65 = vsyncpa [#allocation3], 1
    %66 = vsyncpa [#allocation6], 1
    %67 = vsyncpa [#allocation4], 1

</llo_original>
